<compile_context>
chip_gen: v7x
topology: tpu7x:2x2x1
jax: 0.10.0
libtpu: 0.0.40
codegen_flags: <defaults>
</compile_context>

<pallas_src>
import functools

import jax
import jax.numpy as jnp
from jax.experimental import pallas as pl
from jax.experimental.pallas import tpu as pltpu


def _round_up(x, m):
    return ((x + m - 1) // m) * m


def deepfm_kernel(slab_ref, w1_ref, b1_ref, w2_ref, b2_ref, w3_ref, bias_ref,
                  out_ref, *, nfield, nemb):
    """One batch tile.  slab: (F*E + F, TB), batch on lanes; out: (1, TB)."""
    fe = nfield * nemb
    slab = slab_ref[...]                                    # (F*E + F, TB)
    x = slab[:fe, :]                                        # (F*E, TB)  emb * value
    xf = x.astype(jnp.float32)
    lin_rows = slab[fe:, :].astype(jnp.float32)             # (F, TB)    w_lin * value

    # ---- first-order linear term -> (1, TB)
    lin = jnp.sum(lin_rows, axis=0, keepdims=True)

    # ---- FM second-order term (reduce_dim=True) -> (1, TB)
    # field sum via static sublane slices (VALU adds; no reshape to (B, F, E))
    sum_f = xf[0:nemb, :]
    for f in range(1, nfield):
        sum_f = sum_f + xf[f * nemb:(f + 1) * nemb, :]      # (E, TB)
    square_of_sum = jnp.sum(sum_f * sum_f, axis=0, keepdims=True)
    sum_of_square = jnp.sum(xf * xf, axis=0, keepdims=True)
    fm = 0.5 * (square_of_sum - sum_of_square)              # (1, TB)

    # ---- deep component: MLP on flattened embeddings (batch stays on lanes)
    h = jnp.dot(w1_ref[...], x, preferred_element_type=jnp.float32) + b1_ref[...]
    h = jnp.maximum(h, 0.0)                                 # (nhid, TB) f32
    h = jnp.dot(w2_ref[...], h.astype(w2_ref.dtype),
                preferred_element_type=jnp.float32) + b2_ref[...]
    h = jnp.maximum(h, 0.0)                                 # (nhid, TB) f32
    # nhid -> 1 as VPU multiply + sublane reduce (avoid an N=1 MXU matmul)
    deep = jnp.sum(h * w3_ref[...], axis=0, keepdims=True)  # (1, TB)

    out_ref[...] = lin + fm + deep + bias_ref[0, 0]


def deepfm_forward(ids, values, params, *, block_b=2048,
                   compute_dtype=jnp.float32):
    """ids: (B, F) int32, values: (B, F) f32  ->  y: (B,) f32."""
    B, F = ids.shape
    E = params["emb"].shape[1]
    FE = F * E
    nhid = params["w1"].shape[1]

    # ---- glue in plain JAX: embedding gathers, packed into one transposed slab
    x_emb = params["emb"][ids] * values[..., None]            # (B, F, E)
    lin_vals = params["lin_w"][ids][..., 0] * values          # (B, F)
    slab = jnp.concatenate([x_emb.reshape(B, FE), lin_vals], axis=1)  # (B, FE+F)
    slab = slab.T.astype(compute_dtype)                       # (FE+F, B) lane-dense

    # batch tile along lane axis: multiple of 128, capped by padded batch
    tb = min(_round_up(block_b, 128), _round_up(B, 128))
    b_pad = _round_up(B, tb)
    if b_pad != B:
        slab = jnp.pad(slab, ((0, 0), (0, b_pad - B)))
    grid = (b_pad // tb,)

    # weights transposed to (out, in); small vectors stay f32
    w1t = params["w1"].T.astype(compute_dtype)                # (nhid, FE)
    w2t = params["w2"].T.astype(compute_dtype)                # (nhid, nhid)
    b1c = params["b1"].T.astype(jnp.float32)                  # (nhid, 1)
    b2c = params["b2"].T.astype(jnp.float32)                  # (nhid, 1)
    w3c = params["w3"].astype(jnp.float32)                    # (nhid, 1)
    bias0 = (params["lin_b"] + params["b3"]).astype(jnp.float32)  # (1, 1)

    resident = lambda i: (0, 0)   # weights: fetched once, stay VMEM-resident
    out = pl.pallas_call(
        functools.partial(deepfm_kernel, nfield=F, nemb=E),
        out_shape=jax.ShapeDtypeStruct((1, b_pad), jnp.float32),
        grid=grid,
        in_specs=[
            pl.BlockSpec((FE + F, tb), lambda i: (0, i)),     # slab (batch-tiled)
            pl.BlockSpec((nhid, FE), resident),               # W1^T
            pl.BlockSpec((nhid, 1), resident),                # b1
            pl.BlockSpec((nhid, nhid), resident),             # W2^T
            pl.BlockSpec((nhid, 1), resident),                # b2
            pl.BlockSpec((nhid, 1), resident),                # w3
            pl.BlockSpec((1, 1), resident),                   # lin_b + b3
        ],
        out_specs=pl.BlockSpec((1, tb), lambda i: (0, i)),    # lane-dense output
        compiler_params=pltpu.CompilerParams(
            dimension_semantics=("parallel",),
            vmem_limit_bytes=32 * 1024 * 1024),
    )(slab, w1t, b1c, w2t, b2c, w3c, bias0)
    return out[0, :B]                                         # (B,)


def reference_forward(ids, values, params):
    """Pure-JAX reference matching the torch module semantics."""
    x_emb = params["emb"][ids] * values[..., None]
    lin = jnp.sum(params["lin_w"][ids][..., 0] * values, axis=1) + params["lin_b"][0, 0]
    sum_f = jnp.sum(x_emb, axis=1)
    fm = 0.5 * jnp.sum(sum_f * sum_f - jnp.sum(x_emb * x_emb, axis=1), axis=1)
    h = x_emb.reshape(x_emb.shape[0], -1)
    h = jnp.maximum(h @ params["w1"] + params["b1"], 0.0)
    h = jnp.maximum(h @ params["w2"] + params["b2"], 0.0)
    deep = (h @ params["w3"] + params["b3"])[:, 0]
    return lin + fm + deep


def init_params(key, nfeat, nfield, nemb, nhid):
    ks = jax.random.split(key, 8)
    ninput = nfield * nemb

    def xavier(k, shape):
        fan_in, fan_out = shape[0], shape[-1]
        limit = (6.0 / (fan_in + fan_out)) ** 0.5
        return jax.random.uniform(k, shape, jnp.float32, -limit, limit)

    def linear_init(kw, kb, fin, fout):
        lim = 1.0 / (fin ** 0.5)
        w = jax.random.uniform(kw, (fin, fout), jnp.float32, -lim, lim)
        b = jax.random.uniform(kb, (1, fout), jnp.float32, -lim, lim)
        return w, b

    w1, b1 = linear_init(ks[2], ks[3], ninput, nhid)
    w2, b2 = linear_init(ks[4], ks[5], nhid, nhid)
    w3, b3 = linear_init(ks[6], ks[7], nhid, 1)
    return {
        "emb": xavier(ks[0], (nfeat, nemb)),        # Embedding0 weight
        "lin_w": xavier(ks[1], (nfeat, 1)),         # Linear (order-1) weight
        "lin_b": jnp.zeros((1, 1), jnp.float32),    # Linear bias
        "w1": w1, "b1": b1,                         # MLP layer 1
        "w2": w2, "b2": b2,                         # MLP layer 2
        "w3": w3, "b3": b3,                         # MLP output layer (nhid -> 1)
    }


if __name__ == "__main__":
    B, NFIELD, NFEAT, NEMB, NHID = 8, 4, 100, 8, 32   # mlp_layers=2, dropout=0 (eval)

    key = jax.random.PRNGKey(0)
    k_ids, k_vals, k_params = jax.random.split(key, 3)
    ids = jax.random.randint(k_ids, (B, NFIELD), 0, NFEAT, dtype=jnp.int32)
    values = jax.random.uniform(k_vals, (B, NFIELD), jnp.float32)
    params = init_params(k_params, NFEAT, NFIELD, NEMB, NHID)

    y_ref = reference_forward(ids, values, params)

    # f32 path (module semantics)
    y = deepfm_forward(ids, values, params)
    jax.block_until_ready(y)
    assert y.shape == (B,)
    assert jnp.allclose(y, y_ref, atol=1e-4, rtol=1e-4), (y, y_ref)

    # multi-tile / ragged batch path (exercises grid + padding)
    B2 = 300
    k2a, k2b = jax.random.split(jax.random.PRNGKey(1))
    ids2 = jax.random.randint(k2a, (B2, NFIELD), 0, NFEAT, dtype=jnp.int32)
    vals2 = jax.random.uniform(k2b, (B2, NFIELD), jnp.float32)
    y2 = deepfm_forward(ids2, vals2, params, block_b=128)
    jax.block_until_ready(y2)
    y2_ref = reference_forward(ids2, vals2, params)
    assert jnp.allclose(y2, y2_ref, atol=1e-4, rtol=1e-4)

    # bf16 dominant-stream path (mem-bandwidth optimization) -- looser tolerance
    y_bf16 = deepfm_forward(ids, values, params, compute_dtype=jnp.bfloat16)
    jax.block_until_ready(y_bf16)
    assert jnp.allclose(y_bf16, y_ref, atol=1e-1, rtol=1e-1)

    print("KERNEL_OK")
</pallas_src>

<mosaic_0001>
module attributes {stable_mosaic.version = 11 : i64} {
  func.func @deepfm_kernel(%arg0: i32, %arg1: memref<36x128xf32, #tpu.memory_space<vmem>>, %arg2: memref<32x32xf32, #tpu.memory_space<vmem>>, %arg3: memref<32x1xf32, #tpu.memory_space<vmem>>, %arg4: memref<32x32xf32, #tpu.memory_space<vmem>>, %arg5: memref<32x1xf32, #tpu.memory_space<vmem>>, %arg6: memref<32x1xf32, #tpu.memory_space<vmem>>, %arg7: memref<1x1xf32, #tpu.memory_space<vmem>>, %arg8: memref<1x128xf32, #tpu.memory_space<vmem>>) attributes {dimension_semantics = [#tpu.dimension_semantics<parallel>], iteration_bounds = array<i64: 1>, scalar_prefetch = 0 : i64, scratch_operands = 0 : i64, tpu.core_type = #tpu.core_type<tc>, window_params = [{transform_indices = @transform_0, window_bounds = array<i64: 36, 128>}, {pipeline_mode = #tpu.pipeline_mode<synchronous>, transform_indices = @transform_1, window_bounds = array<i64: 32, 32>}, {pipeline_mode = #tpu.pipeline_mode<synchronous>, transform_indices = @transform_2, window_bounds = array<i64: 32, 1>}, {pipeline_mode = #tpu.pipeline_mode<synchronous>, transform_indices = @transform_3, window_bounds = array<i64: 32, 32>}, {pipeline_mode = #tpu.pipeline_mode<synchronous>, transform_indices = @transform_4, window_bounds = array<i64: 32, 1>}, {pipeline_mode = #tpu.pipeline_mode<synchronous>, transform_indices = @transform_5, window_bounds = array<i64: 32, 1>}, {pipeline_mode = #tpu.pipeline_mode<synchronous>, transform_indices = @transform_6, window_bounds = array<i64: 1, 1>}, {transform_indices = @transform_7, window_bounds = array<i64: 1, 128>}]} {
    %c0 = arith.constant 0 : index
    %c0_0 = arith.constant 0 : index
    %0 = vector.load %arg1[%c0, %c0_0] : memref<36x128xf32, #tpu.memory_space<vmem>>, vector<36x128xf32>
    %1 = vector.extract_strided_slice %0 {offsets = [0, 0], sizes = [32, 128], strides = [1, 1]} : vector<36x128xf32> to vector<32x128xf32>
    %2 = vector.extract_strided_slice %0 {offsets = [32, 0], sizes = [4, 128], strides = [1, 1]} : vector<36x128xf32> to vector<4x128xf32>
    %cst = arith.constant dense<0.000000e+00> : vector<128xf32>
    %3 = vector.multi_reduction <add>, %2, %cst [0] : vector<4x128xf32> to vector<128xf32>
    %4 = vector.shape_cast %3 : vector<128xf32> to vector<1x128xf32>
    %5 = vector.extract_strided_slice %1 {offsets = [0, 0], sizes = [8, 128], strides = [1, 1]} : vector<32x128xf32> to vector<8x128xf32>
    %6 = vector.extract_strided_slice %1 {offsets = [8, 0], sizes = [8, 128], strides = [1, 1]} : vector<32x128xf32> to vector<8x128xf32>
    %7 = arith.addf %5, %6 : vector<8x128xf32>
    %8 = vector.extract_strided_slice %1 {offsets = [16, 0], sizes = [8, 128], strides = [1, 1]} : vector<32x128xf32> to vector<8x128xf32>
    %9 = arith.addf %7, %8 : vector<8x128xf32>
    %10 = vector.extract_strided_slice %1 {offsets = [24, 0], sizes = [8, 128], strides = [1, 1]} : vector<32x128xf32> to vector<8x128xf32>
    %11 = arith.addf %9, %10 : vector<8x128xf32>
    %12 = arith.mulf %11, %11 : vector<8x128xf32>
    %cst_1 = arith.constant dense<0.000000e+00> : vector<128xf32>
    %13 = vector.multi_reduction <add>, %12, %cst_1 [0] : vector<8x128xf32> to vector<128xf32>
    %14 = vector.shape_cast %13 : vector<128xf32> to vector<1x128xf32>
    %15 = arith.mulf %1, %1 : vector<32x128xf32>
    %cst_2 = arith.constant dense<0.000000e+00> : vector<128xf32>
    %16 = vector.multi_reduction <add>, %15, %cst_2 [0] : vector<32x128xf32> to vector<128xf32>
    %17 = vector.shape_cast %16 : vector<128xf32> to vector<1x128xf32>
    %18 = arith.subf %14, %17 : vector<1x128xf32>
    %cst_3 = arith.constant 5.000000e-01 : f32
    %19 = vector.broadcast %cst_3 : f32 to vector<1x128xf32>
    %20 = arith.mulf %19, %18 : vector<1x128xf32>
    %c0_4 = arith.constant 0 : index
    %c0_5 = arith.constant 0 : index
    %21 = vector.load %arg2[%c0_4, %c0_5] : memref<32x32xf32, #tpu.memory_space<vmem>>, vector<32x32xf32>
    %cst_6 = arith.constant dense<0.000000e+00> : vector<32x128xf32>
    %22 = tpu.matmul %21, %1, %cst_6 {dimension_numbers = #tpu.dot_dimension_numbers<[1], [0], [0], [1], [0, 0, 1, 1], [], []>} : vector<32x32xf32>, vector<32x128xf32>, vector<32x128xf32> -> vector<32x128xf32>
    %c0_7 = arith.constant 0 : index
    %c0_8 = arith.constant 0 : index
    %23 = vector.load %arg3[%c0_7, %c0_8] : memref<32x1xf32, #tpu.memory_space<vmem>>, vector<32x1xf32>
    %24 = vector.broadcast %23 : vector<32x1xf32> to vector<32x128xf32>
    %25 = arith.addf %22, %24 : vector<32x128xf32>
    %cst_9 = arith.constant 0.000000e+00 : f32
    %26 = vector.broadcast %cst_9 : f32 to vector<32x128xf32>
    %27 = arith.maximumf %25, %26 : vector<32x128xf32>
    %c0_10 = arith.constant 0 : index
    %c0_11 = arith.constant 0 : index
    %28 = vector.load %arg4[%c0_10, %c0_11] : memref<32x32xf32, #tpu.memory_space<vmem>>, vector<32x32xf32>
    %cst_12 = arith.constant dense<0.000000e+00> : vector<32x128xf32>
    %29 = tpu.matmul %28, %27, %cst_12 {dimension_numbers = #tpu.dot_dimension_numbers<[1], [0], [0], [1], [0, 0, 1, 1], [], []>} : vector<32x32xf32>, vector<32x128xf32>, vector<32x128xf32> -> vector<32x128xf32>
    %c0_13 = arith.constant 0 : index
    %c0_14 = arith.constant 0 : index
    %30 = vector.load %arg5[%c0_13, %c0_14] : memref<32x1xf32, #tpu.memory_space<vmem>>, vector<32x1xf32>
    %31 = vector.broadcast %30 : vector<32x1xf32> to vector<32x128xf32>
    %32 = arith.addf %29, %31 : vector<32x128xf32>
    %cst_15 = arith.constant 0.000000e+00 : f32
    %33 = vector.broadcast %cst_15 : f32 to vector<32x128xf32>
    %34 = arith.maximumf %32, %33 : vector<32x128xf32>
    %c0_16 = arith.constant 0 : index
    %c0_17 = arith.constant 0 : index
    %35 = vector.load %arg6[%c0_16, %c0_17] : memref<32x1xf32, #tpu.memory_space<vmem>>, vector<32x1xf32>
    %36 = vector.broadcast %35 : vector<32x1xf32> to vector<32x128xf32>
    %37 = arith.mulf %34, %36 : vector<32x128xf32>
    %cst_18 = arith.constant dense<0.000000e+00> : vector<128xf32>
    %38 = vector.multi_reduction <add>, %37, %cst_18 [0] : vector<32x128xf32> to vector<128xf32>
    %39 = vector.shape_cast %38 : vector<128xf32> to vector<1x128xf32>
    %40 = arith.addf %4, %20 : vector<1x128xf32>
    %41 = arith.addf %40, %39 : vector<1x128xf32>
    %c0_19 = arith.constant 0 : index
    %c0_20 = arith.constant 0 : index
    %42 = vector.load %arg7[%c0_19, %c0_20] : memref<1x1xf32, #tpu.memory_space<vmem>>, vector<1x1xf32>
    %43 = vector.extract %42[0, 0] : f32 from vector<1x1xf32>
    %44 = vector.broadcast %43 : f32 to vector<1x128xf32>
    %45 = arith.addf %41, %44 : vector<1x128xf32>
    %c0_21 = arith.constant 0 : index
    %c0_22 = arith.constant 0 : index
    %46 = vector.load %arg8[%c0_21, %c0_22] : memref<1x128xf32, #tpu.memory_space<vmem>>, vector<1x128xf32>
    tpu.vector_store %arg8[%c0_21, %c0_22], %45 {strides = array<i32>} : memref<1x128xf32, #tpu.memory_space<vmem>>, vector<1x128xf32>,
    return
  }
  func.func @transform_0(%arg0: i32) -> (i32, i32) {
    %c0_i32 = arith.constant 0 : i32
    %c0_i32_0 = arith.constant 0 : i32
    return %c0_i32, %arg0 : i32, i32
  }
  func.func @transform_1(%arg0: i32) -> (i32, i32) {
    %c0_i32 = arith.constant 0 : i32
    %c0_i32_0 = arith.constant 0 : i32
    %c0_i32_1 = arith.constant 0 : i32
    return %c0_i32, %c0_i32_0 : i32, i32
  }
  func.func @transform_2(%arg0: i32) -> (i32, i32) {
    %c0_i32 = arith.constant 0 : i32
    %c0_i32_0 = arith.constant 0 : i32
    %c0_i32_1 = arith.constant 0 : i32
    return %c0_i32, %c0_i32_0 : i32, i32
  }
  func.func @transform_3(%arg0: i32) -> (i32, i32) {
    %c0_i32 = arith.constant 0 : i32
    %c0_i32_0 = arith.constant 0 : i32
    %c0_i32_1 = arith.constant 0 : i32
    return %c0_i32, %c0_i32_0 : i32, i32
  }
  func.func @transform_4(%arg0: i32) -> (i32, i32) {
    %c0_i32 = arith.constant 0 : i32
    %c0_i32_0 = arith.constant 0 : i32
    %c0_i32_1 = arith.constant 0 : i32
    return %c0_i32, %c0_i32_0 : i32, i32
  }
  func.func @transform_5(%arg0: i32) -> (i32, i32) {
    %c0_i32 = arith.constant 0 : i32
    %c0_i32_0 = arith.constant 0 : i32
    %c0_i32_1 = arith.constant 0 : i32
    return %c0_i32, %c0_i32_0 : i32, i32
  }
  func.func @transform_6(%arg0: i32) -> (i32, i32) {
    %c0_i32 = arith.constant 0 : i32
    %c0_i32_0 = arith.constant 0 : i32
    %c0_i32_1 = arith.constant 0 : i32
    return %c0_i32, %c0_i32_0 : i32, i32
  }
  func.func @transform_7(%arg0: i32) -> (i32, i32) {
    %c0_i32 = arith.constant 0 : i32
    %c0_i32_0 = arith.constant 0 : i32
    return %c0_i32, %arg0 : i32, i32
  }
}

</mosaic_0001>

<llo_original>
// kernel: tpu_custom_call.1
$region0: #{tpu_custom_call.1}
  #allocation0 [shape = 'u32[]', space=smem, size = 0x4, offset = 0x4, fixed_abs, tag = 'smem constant byte address 0x4 - core index']
  #allocation1 [shape = 'u32[144,128]{1,0:T(1,128)}', space=vmem, size = 0x12000, scoped, tag = 'internal scratch']
  #allocation2 [shape = 'f32[1,1]{1,0:T(1,128)S(1)}', space=vmem, size = 0x200, scoped, tag = 'scoped memory for tpu_custom_call.1']
  %s0 = inlined_call_operand.vmem [shape: f32[36,128], index: 0, kind: input, shape index: {}]
  %s1 = inlined_call_operand.vmem [shape: f32[32,32], index: 1, kind: input, shape index: {}]
  %s2 = inlined_call_operand.vmem [shape: f32[32,1], index: 2, kind: input, shape index: {}]
  %s3 = inlined_call_operand.vmem [shape: f32[32,32], index: 3, kind: input, shape index: {}]
  %s4 = inlined_call_operand.vmem [shape: f32[32,1], index: 4, kind: input, shape index: {}]
  %s5 = inlined_call_operand.vmem [shape: f32[32,1], index: 5, kind: input, shape index: {}]
  %s6 = inlined_call_operand.<no memory space> [shape: f32[1,1], index: 6, kind: input, shape index: {}]
  %s7 = inlined_call_operand.hbm [shape: f32[1,128], index: 7, kind: output, shape index: {}]
  %s8 = sld [smem:[#allocation0]]
  $region38: #{tpu_custom_call.1} parent=0
    _
  %s10 = ssub.s32 1, %s8
  %s11 = scalar_select 0, %s10, %s8
  %v12 = vstv %s6
  %13 = vst [vmem:[#allocation2] sm:$0x1] %v12
  $region1: #{tpu_custom_call.1} parent=0
    #allocation3 [shape = 'u8[512]{0}', space=vmem, size = 0x400, scoped, tag = 'output window, operand 0, single buffered']
    #allocation4 [shape = 's32[1]{0}', space=sflag, size = 0x4, scoped, tag = 'scoped memory for tpu_custom_call.1']
    %14 = vsyncpa [#allocation4], 0
    // Predicated region
    $region2: #{tpu_custom_call.1} parent=1 // pred_check
      _
    $region3: #{tpu_custom_call.1} parent=1 // pred_check_branch
      %16 = sbr.rel (0) target = $region5
    $region4: #{tpu_custom_call.1} parent=1 // pred_region
      _
    $region5: #{tpu_custom_call.1} parent=1 // pred_fallthru
      _
    // Predicated region
    $region6: #{tpu_custom_call.1} parent=1 // pred_check
      _
    $region7: #{tpu_custom_call.1} parent=1 // pred_check_branch
      %18 = sbr.rel (0) target = $region9
    $region8: #{tpu_custom_call.1} parent=1 // pred_region
      _
    $region9: #{tpu_custom_call.1} parent=1 // pred_fallthru
      _
    // Predicated region
    $region10: #{tpu_custom_call.1} parent=1 // pred_check
      _
    $region11: #{tpu_custom_call.1} parent=1 // pred_check_branch
      %20 = sbr.rel (0) target = $region13
    $region12: #{tpu_custom_call.1} parent=1 // pred_region
      _
    $region13: #{tpu_custom_call.1} parent=1 // pred_fallthru
      _
    // Predicated region
    $region14: #{tpu_custom_call.1} parent=1 // pred_check
      _
    $region15: #{tpu_custom_call.1} parent=1 // pred_check_branch
      %22 = sbr.rel (0) target = $region17
    $region16: #{tpu_custom_call.1} parent=1 // pred_region
      _
    $region17: #{tpu_custom_call.1} parent=1 // pred_fallthru
      _
    // Predicated region
    $region18: #{tpu_custom_call.1} parent=1 // pred_check
      _
    $region19: #{tpu_custom_call.1} parent=1 // pred_check_branch
      %24 = sbr.rel (0) target = $region21
    $region20: #{tpu_custom_call.1} parent=1 // pred_region
      _
    $region21: #{tpu_custom_call.1} parent=1 // pred_fallthru
      _
    // Predicated region
    $region22: #{tpu_custom_call.1} parent=1 // pred_check
      _
    $region23: #{tpu_custom_call.1} parent=1 // pred_check_branch
      %26 = sbr.rel (0) target = $region25
    $region24: #{tpu_custom_call.1} parent=1 // pred_region
      _
    $region25: #{tpu_custom_call.1} parent=1 // pred_fallthru
      _
    // Predicated region
    $region26: #{tpu_custom_call.1} parent=1 // pred_check
      _
    $region27: #{tpu_custom_call.1} parent=1 // pred_check_branch
      %28 = sbr.rel (0) target = $region29
    $region28: #{tpu_custom_call.1} parent=1 // pred_region
      _
    $region29: #{tpu_custom_call.1} parent=1 // pred_fallthru
      _
    %v29 = vld [vmem:[%s0] sm:$0xff]
    %v30 = vld [vmem:[%s0 + $0x8] sm:$0xff]
    %v31 = vld [vmem:[%s0 + $0x10] sm:$0xff]
    %v32 = vld [vmem:[%s0 + $0x18] sm:$0xff]
    %v33 = vld [vmem:[%s0 + $0x20] sm:$0xf]
    %vm34 = vcmask 1043456
    %v35 = vsel %vm34, %v33, 0.0
    %v36 = vrot.slane %v35, 4
    %v37 = vadd.f32 %v35, %v36
    %v38 = vrot.slane %v37, 2
    %v39 = vadd.f32 %v37, %v38
    %v40 = vrot.slane %v39, 1
    %v41 = vadd.f32 %v39, %v40
    %v42 = vadd.f32 %v29, %v30
    %v43 = vadd.f32 %v42, %v31
    %v44 = vadd.f32 %v43, %v32
    %v45 = vmul.f32 %v44, %v44
    %v46 = vrot.slane %v45, 4
    %v47 = vadd.f32 %v45, %v46
    %v48 = vrot.slane %v47, 2
    %v49 = vadd.f32 %v47, %v48
    %v50 = vrot.slane %v49, 1
    %v51 = vadd.f32 %v49, %v50
    %v52 = vmul.f32 %v29, %v29
    %v53 = vmul.f32 %v30, %v30
    %v54 = vmul.f32 %v31, %v31
    %v55 = vmul.f32 %v32, %v32
    %v56 = vadd.f32 %v52, %v53
    %v57 = vadd.f32 %v56, %v54
    %v58 = vadd.f32 %v57, %v55
    %v59 = vrot.slane %v58, 4
    %v60 = vadd.f32 %v58, %v59
    %v61 = vrot.slane %v60, 2
    %v62 = vadd.f32 %v60, %v61
    %v63 = vrot.slane %v62, 1
    %v64 = vadd.f32 %v62, %v63
    %v65 = vsub.f32 %v51, %v64
    %v66 = vmul.f32 %v65, 0.5
    %v67 = vld [vmem:[%s1] sm:$0xff]
    %v68 = vld [vmem:[%s1 + $0x8] sm:$0xff]
    %v69 = vld [vmem:[%s1 + $0x10] sm:$0xff]
    %v70 = vld [vmem:[%s1 + $0x18] sm:$0xff]
    %v71 = vld [vmem:[%s2] sm:$0xff]
    %v72 = vld [vmem:[%s2 + $0x8] sm:$0xff]
    %v73 = vld [vmem:[%s2 + $0x10] sm:$0xff]
    %v74 = vld [vmem:[%s2 + $0x18] sm:$0xff]
    %76 = vset.pattern.permute.xlu0 0
    %77 = vperm.xlu0 %76, %v71
    %v78 = vpop.permute.xlu0 %77
    %81 = vset.pattern.permute.xlu0 0
    %82 = vperm.xlu0 %81, %v72
    %v83 = vpop.permute.xlu0 %82
    %86 = vset.pattern.permute.xlu0 0
    %87 = vperm.xlu0 %86, %v73
    %v88 = vpop.permute.xlu0 %87
    %91 = vset.pattern.permute.xlu0 0
    %92 = vperm.xlu0 %91, %v74
    %v93 = vpop.permute.xlu0 %92
    %vm95 = vcmask 261120
    %v97 = vsel %vm95, %v67, 0
    %v100 = vsel %vm95, %v68, 0
    %v103 = vsel %vm95, %v69, 0
    %v106 = vsel %vm95, %v70, 0
    %108 = vmatprep.subr.mxu0 0.0
    %109 = vmatpush1.msra.mxu0 %v29
    %110 = vmatprep.subr.mxu0 0.0
    %111 = vmatpush1.msra.mxu0 %v30
    %112 = vmatprep.subr.mxu0 0.0
    %113 = vmatpush1.msra.mxu0 %v31
    %114 = vmatprep.subr.mxu0 0.0
    %115 = vmatpush1.msra.mxu0 %v32
    %116 = vmatprep.subr.mxu0 0.0
    %117 = vmatpush1.msra.mxu0 0.0
    %118 = vmatprep.subr.mxu0 0.0
    %119 = vmatpush1.msra.mxu0 0.0
    %120 = vmatprep.subr.mxu0 0.0
    %121 = vmatpush1.msra.mxu0 0.0
    %122 = vmatprep.subr.mxu0 0.0
    %123 = vmatpush1.msra.mxu0 0.0
    %124 = vmatprep.subr.mxu0 0.0
    %125 = vmatpush1.msra.mxu0 0.0
    %126 = vmatprep.subr.mxu0 0.0
    %127 = vmatpush1.msra.mxu0 0.0
    %128 = vmatprep.subr.mxu0 0.0
    %129 = vmatpush1.msra.mxu0 0.0
    %130 = vmatprep.subr.mxu0 0.0
    %131 = vmatpush1.msra.mxu0 0.0
    %132 = vmatprep.subr.mxu0 0.0
    %133 = vmatpush1.msra.mxu0 0.0
    %134 = vmatprep.subr.mxu0 0.0
    %135 = vmatpush1.msra.mxu0 0.0
    %136 = vmatprep.subr.mxu0 0.0
    %137 = vmatpush1.msra.mxu0 0.0
    %138 = vmatprep.subr.mxu0 0.0
    %139 = vmatpush1.msra.mxu0 0.0
    %140 = vmatprep.subr.mxu0 0.0
    %141 = vmatpush1.msra.mxu0 0.0
    %142 = vmatprep.subr.mxu0 0.0
    %143 = vmatpush1.msra.mxu0 0.0
    %144 = vmatprep.subr.mxu0 0.0
    %145 = vmatpush1.msra.mxu0 0.0
    %146 = vmatprep.subr.mxu0 0.0
    %147 = vmatpush1.msra.mxu0 0.0
    %148 = vmatprep.subr.mxu0 0.0
    %149 = vmatpush1.msra.mxu0 0.0
    %150 = vmatprep.subr.mxu0 0.0
    %151 = vmatpush1.msra.mxu0 0.0
    %152 = vmatprep.subr.mxu0 0.0
    %153 = vmatpush1.msra.mxu0 0.0
    %154 = vmatprep.subr.mxu0 0.0
    %155 = vmatpush1.msra.mxu0 0.0
    %156 = vmatprep.subr.mxu0 0.0
    %157 = vmatpush1.msra.mxu0 0.0
    %158 = vmatprep.subr.mxu0 0.0
    %159 = vmatpush1.msra.mxu0 0.0
    %160 = vmatprep.subr.mxu0 0.0
    %161 = vmatpush1.msra.mxu0 0.0
    %162 = vmatprep.subr.mxu0 0.0
    %163 = vmatpush1.msra.mxu0 0.0
    %164 = vmatprep.subr.mxu0 0.0
    %165 = vmatpush1.msra.mxu0 0.0
    %166 = vmatprep.subr.mxu0 0.0
    %167 = vmatpush1.msra.mxu0 0.0
    %168 = vmatprep.subr.mxu0 0.0
    %169 = vmatpush1.msra.mxu0 0.0
    %170 = vmatprep.subr.mxu0 0.0
    %171 = vmatpush1.msra.mxu0 0.0
    %172 = vmatprep.mubr.f32.mxu0 0.0
    %173 = vmatmul.mubr.f32.gmra.mrb[0].mxu0 %v97
    %v174 = vpop.f32.mrb[0].mxu0
    %v175 = vadd.f32 %v78, %v174
    %v176 = vpop.f32.mrb[0].mxu0
    %177 = vmatprep.mubr.f32.mxu0 0.0
    %178 = vmatmul.mubr.f32.gmra.mrb[0].mxu0 %v100
    %v179 = vpop.f32.mrb[0].mxu0
    %v180 = vadd.f32 %v83, %v179
    %v181 = vpop.f32.mrb[0].mxu0
    %182 = vmatprep.mubr.f32.mxu0 0.0
    %183 = vmatmul.mubr.f32.gmra.mrb[0].mxu0 %v103
    %v184 = vpop.f32.mrb[0].mxu0
    %v185 = vadd.f32 %v88, %v184
    %v186 = vpop.f32.mrb[0].mxu0
    %187 = vmatprep.mubr.f32.mxu0 0.0
    %188 = vmatmul.mubr.f32.gmra.mrb[0].mxu0 %v106
    %v189 = vpop.f32.mrb[0].mxu0
    %v190 = vadd.f32 %v93, %v189
    %v191 = vpop.f32.mrb[0].mxu0
    %192 = vdwg.mxu0
    %v193 = vmax.f32 %v175, 0.0
    %v194 = vmax.f32 %v180, 0.0
    %v195 = vmax.f32 %v185, 0.0
    %v196 = vmax.f32 %v190, 0.0
    %v197 = vld [vmem:[%s3] sm:$0xff]
    %v198 = vld [vmem:[%s3 + $0x8] sm:$0xff]
    %v199 = vld [vmem:[%s3 + $0x10] sm:$0xff]
    %v200 = vld [vmem:[%s3 + $0x18] sm:$0xff]
    %v201 = vld [vmem:[%s4] sm:$0xff]
    %v202 = vld [vmem:[%s4 + $0x8] sm:$0xff]
    %v203 = vld [vmem:[%s4 + $0x10] sm:$0xff]
    %v204 = vld [vmem:[%s4 + $0x18] sm:$0xff]
    %206 = vset.pattern.permute.xlu0 0
    %207 = vperm.xlu0 %206, %v201
    %v208 = vpop.permute.xlu0 %207
    %211 = vset.pattern.permute.xlu0 0
    %212 = vperm.xlu0 %211, %v202
    %v213 = vpop.permute.xlu0 %212
    %216 = vset.pattern.permute.xlu0 0
    %217 = vperm.xlu0 %216, %v203
    %v218 = vpop.permute.xlu0 %217
    %221 = vset.pattern.permute.xlu0 0
    %222 = vperm.xlu0 %221, %v204
    %v223 = vpop.permute.xlu0 %222
    %v226 = vsel %vm95, %v197, 0
    %v229 = vsel %vm95, %v198, 0
    %v232 = vsel %vm95, %v199, 0
    %v235 = vsel %vm95, %v200, 0
    %237 = vmatprep.subr.mxu0 0.0
    %238 = vmatpush1.msra.mxu0 %v193
    %239 = vmatprep.subr.mxu0 0.0
    %240 = vmatpush1.msra.mxu0 %v194
    %241 = vmatprep.subr.mxu0 0.0
    %242 = vmatpush1.msra.mxu0 %v195
    %243 = vmatprep.subr.mxu0 0.0
    %244 = vmatpush1.msra.mxu0 %v196
    %245 = vmatprep.subr.mxu0 0.0
    %246 = vmatpush1.msra.mxu0 0.0
    %247 = vmatprep.subr.mxu0 0.0
    %248 = vmatpush1.msra.mxu0 0.0
    %249 = vmatprep.subr.mxu0 0.0
    %250 = vmatpush1.msra.mxu0 0.0
    %251 = vmatprep.subr.mxu0 0.0
    %252 = vmatpush1.msra.mxu0 0.0
    %253 = vmatprep.subr.mxu0 0.0
    %254 = vmatpush1.msra.mxu0 0.0
    %255 = vmatprep.subr.mxu0 0.0
    %256 = vmatpush1.msra.mxu0 0.0
    %257 = vmatprep.subr.mxu0 0.0
    %258 = vmatpush1.msra.mxu0 0.0
    %259 = vmatprep.subr.mxu0 0.0
    %260 = vmatpush1.msra.mxu0 0.0
    %261 = vmatprep.subr.mxu0 0.0
    %262 = vmatpush1.msra.mxu0 0.0
    %263 = vmatprep.subr.mxu0 0.0
    %264 = vmatpush1.msra.mxu0 0.0
    %265 = vmatprep.subr.mxu0 0.0
    %266 = vmatpush1.msra.mxu0 0.0
    %267 = vmatprep.subr.mxu0 0.0
    %268 = vmatpush1.msra.mxu0 0.0
    %269 = vmatprep.subr.mxu0 0.0
    %270 = vmatpush1.msra.mxu0 0.0
    %271 = vmatprep.subr.mxu0 0.0
    %272 = vmatpush1.msra.mxu0 0.0
    %273 = vmatprep.subr.mxu0 0.0
    %274 = vmatpush1.msra.mxu0 0.0
    %275 = vmatprep.subr.mxu0 0.0
    %276 = vmatpush1.msra.mxu0 0.0
    %277 = vmatprep.subr.mxu0 0.0
    %278 = vmatpush1.msra.mxu0 0.0
    %279 = vmatprep.subr.mxu0 0.0
    %280 = vmatpush1.msra.mxu0 0.0
    %281 = vmatprep.subr.mxu0 0.0
    %282 = vmatpush1.msra.mxu0 0.0
    %283 = vmatprep.subr.mxu0 0.0
    %284 = vmatpush1.msra.mxu0 0.0
    %285 = vmatprep.subr.mxu0 0.0
    %286 = vmatpush1.msra.mxu0 0.0
    %287 = vmatprep.subr.mxu0 0.0
    %288 = vmatpush1.msra.mxu0 0.0
    %289 = vmatprep.subr.mxu0 0.0
    %290 = vmatpush1.msra.mxu0 0.0
    %291 = vmatprep.subr.mxu0 0.0
    %292 = vmatpush1.msra.mxu0 0.0
    %293 = vmatprep.subr.mxu0 0.0
    %294 = vmatpush1.msra.mxu0 0.0
    %295 = vmatprep.subr.mxu0 0.0
    %296 = vmatpush1.msra.mxu0 0.0
    %297 = vmatprep.subr.mxu0 0.0
    %298 = vmatpush1.msra.mxu0 0.0
    %299 = vmatprep.subr.mxu0 0.0
    %300 = vmatpush1.msra.mxu0 0.0
    %301 = vmatprep.mubr.f32.mxu0 0.0
    %302 = vmatmul.mubr.f32.gmra.mrb[0].mxu0 %v226
    %v303 = vpop.f32.mrb[0].mxu0
    %v304 = vadd.f32 %v208, %v303
    %v305 = vpop.f32.mrb[0].mxu0
    %306 = vmatprep.mubr.f32.mxu0 0.0
    %307 = vmatmul.mubr.f32.gmra.mrb[0].mxu0 %v229
    %v308 = vpop.f32.mrb[0].mxu0
    %v309 = vadd.f32 %v213, %v308
    %v310 = vpop.f32.mrb[0].mxu0
    %311 = vmatprep.mubr.f32.mxu0 0.0
    %312 = vmatmul.mubr.f32.gmra.mrb[0].mxu0 %v232
    %v313 = vpop.f32.mrb[0].mxu0
    %v314 = vadd.f32 %v218, %v313
    %v315 = vpop.f32.mrb[0].mxu0
    %316 = vmatprep.mubr.f32.mxu0 0.0
    %317 = vmatmul.mubr.f32.gmra.mrb[0].mxu0 %v235
    %v318 = vpop.f32.mrb[0].mxu0
    %v319 = vadd.f32 %v223, %v318
    %v320 = vpop.f32.mrb[0].mxu0
    %321 = vdwg.mxu0
    %v322 = vmax.f32 %v304, 0.0
    %v323 = vmax.f32 %v309, 0.0
    %v324 = vmax.f32 %v314, 0.0
    %v325 = vmax.f32 %v319, 0.0
    %v326 = vld [vmem:[%s5] sm:$0xff]
    %v327 = vld [vmem:[%s5 + $0x8] sm:$0xff]
    %v328 = vld [vmem:[%s5 + $0x10] sm:$0xff]
    %v329 = vld [vmem:[%s5 + $0x18] sm:$0xff]
    %331 = vset.pattern.permute.xlu0 0
    %332 = vperm.xlu0 %331, %v326
    %v333 = vpop.permute.xlu0 %332
    %336 = vset.pattern.permute.xlu0 0
    %337 = vperm.xlu0 %336, %v327
    %v338 = vpop.permute.xlu0 %337
    %341 = vset.pattern.permute.xlu0 0
    %342 = vperm.xlu0 %341, %v328
    %v343 = vpop.permute.xlu0 %342
    %346 = vset.pattern.permute.xlu0 0
    %347 = vperm.xlu0 %346, %v329
    %v348 = vpop.permute.xlu0 %347
    %v350 = vmul.f32 %v322, %v333
    %v351 = vmul.f32 %v323, %v338
    %v352 = vmul.f32 %v324, %v343
    %v353 = vmul.f32 %v325, %v348
    %v354 = vadd.f32 %v350, %v351
    %v355 = vadd.f32 %v354, %v352
    %v356 = vadd.f32 %v355, %v353
    %v357 = vrot.slane %v356, 4
    %v358 = vadd.f32 %v356, %v357
    %v359 = vrot.slane %v358, 2
    %v360 = vadd.f32 %v358, %v359
    %v361 = vrot.slane %v360, 1
    %v362 = vadd.f32 %v360, %v361
    %v363 = vadd.f32 %v41, %v66
    %v364 = vadd.f32 %v363, %v362
    %v365 = vld [vmem:[#allocation2] sm:$0x1]
    %s366 = vtos %v365
    %v367 = vstv %s366
    %v368 = vadd.f32 %v364, %v367
    %369 = vst [vmem:[#allocation3] sm:$0x1] %v368
    // Predicated region
    $region30: #{tpu_custom_call.1} parent=1 // pred_check
      _
    $region31: #{tpu_custom_call.1} parent=1 // pred_check_branch
      %371 = sbr.rel (0) target = $region33
    $region32: #{tpu_custom_call.1} parent=1 // pred_region
      %s373 = ssub.s32 16, 16
      %374 = vsyncadd [#allocation4], %s373
      %s376 = sshll.u32 [#allocation3], 4
      %s377 = int_to_ptr.vmem [resolvable:$true] %s376
      %379 = dma.vmem_to_hbm [thread:$0]  %s377, 16, %s7, [#allocation4]
    $region33: #{tpu_custom_call.1} parent=1 // pred_fallthru
      _
    // Predicated region
    $region34: #{tpu_custom_call.1} parent=1 // pred_check
      _
    $region35: #{tpu_custom_call.1} parent=1 // pred_check_branch
      %381 = sbr.rel (0) target = $region37
    $region36: #{tpu_custom_call.1} parent=1 // pred_region
      %382 = dma.done [#allocation4], 16
    $region37: #{tpu_custom_call.1} parent=1 // pred_fallthru
      _
    %383 = vsyncpa [#allocation4], 1

</llo_original>
